<compile_context>
chip_gen: v7x
topology: tpu7x:2x2x1
jax: 0.10.0
libtpu: 0.0.40
codegen_flags: <defaults>
</compile_context>

<pallas_src>
import functools

import jax
import jax.numpy as jnp
from jax.experimental import pallas as pl
from jax.experimental.pallas import tpu as pltpu


def _cna_kernel(x_ref, w_ref, o_ref, *, H, W, Cin, eps):
    # x_ref: (1, Cin, H*W)        one image, spatial flattened into lanes
    # w_ref: (9, Co_blk, Cin)     conv taps for this Cout tile, tap = dh*3 + dw
    # o_ref: (1, Co_blk, H*W)     lane-dense output tile (NCHW with flat spatial)
    HW = H * W
    co_blk = o_ref.shape[1]
    x = x_ref[0]  # (Cin, HW)

    # Lane-position masks for the horizontal (dw) taps of the 3x3 window:
    # zero the output lanes whose shifted source wrapped across a row boundary.
    col = jax.lax.broadcasted_iota(jnp.int32, (1, HW), 1)
    wpos = col % W
    not_left_edge = wpos != 0          # valid output lanes for dw == 0 taps
    not_right_edge = wpos != (W - 1)   # valid output lanes for dw == 2 taps

    def shift(v, off):
        # y[:, p] = v[:, p + off], zero-filled outside [0, HW).
        # The zero fill is exactly the top/bottom padding row of the conv.
        if off == 0:
            return v
        if off > 0:
            return jnp.concatenate(
                [v[:, off:], jnp.zeros((Cin, off), v.dtype)], axis=1)
        return jnp.concatenate(
            [jnp.zeros((Cin, -off), v.dtype), v[:, :HW + off]], axis=1)

    # 3x3 conv (stride 1, pad 1) as 9 shifted channel matmuls, lane-dense output.
    acc = jnp.zeros((co_blk, HW), dtype=jnp.float32)
    for dh in range(3):
        for dw in range(3):
            off = (dh - 1) * W + (dw - 1)
            xs = shift(x, off)
            if dw == 0:
                xs = jnp.where(not_left_edge, xs, 0.0)
            elif dw == 2:
                xs = jnp.where(not_right_edge, xs, 0.0)
            acc = acc + jnp.dot(w_ref[dh * 3 + dw], xs,
                                preferred_element_type=jnp.float32)

    # InstanceNorm2d(affine=False): per (image, channel), biased variance.
    # One-pass stats over the spatial lanes (f32 throughout).
    inv_hw = 1.0 / float(HW)
    s = jnp.sum(acc, axis=1, keepdims=True)          # (Co_blk, 1)
    ss = jnp.sum(acc * acc, axis=1, keepdims=True)   # (Co_blk, 1)
    mean = s * inv_hw
    var = ss * inv_hw - mean * mean
    y = (acc - mean) * jax.lax.rsqrt(var + eps)

    # ReLU
    y = jnp.maximum(y, 0.0)

    o_ref[...] = y[None].astype(o_ref.dtype)


def _pick_cout_tile(cout):
    # Largest multiple-of-8 divisor of Cout that is <= 256; otherwise the
    # whole Cout (a full-extent block is always layout-legal).
    if cout <= 256:
        return cout
    for t in range(256, 0, -8):
        if cout % t == 0:
            return t
    return cout


def cna_forward(x_nchw, w_oihw, b=None, *, eps=1e-5):
    """x_nchw: (N, Cin, H, W) (PyTorch layout), w_oihw: (Cout, Cin, 3, 3).

    `b` (Conv2d bias) is accepted for interface parity but unused: under
    InstanceNorm2d(affine=False) a per-channel constant is cancelled exactly by
    the mean subtraction, so the forward result is unchanged.
    """
    del b
    N, Cin, H, W = x_nchw.shape
    Cout = w_oihw.shape[0]
    HW = H * W

    x_flat = x_nchw.reshape(N, Cin, HW)                       # free reshape
    # (Cout, Cin, kh, kw) -> (kh, kw, Cout, Cin) -> (9, Cout, Cin)
    w_taps = jnp.transpose(w_oihw, (2, 3, 0, 1)).reshape(9, Cout, Cin)

    co_blk = _pick_cout_tile(Cout)
    n_co = Cout // co_blk

    kernel = functools.partial(_cna_kernel, H=H, W=W, Cin=Cin, eps=eps)

    # Grid order (n outer, co inner): the (bigger) x block index does not
    # change while co cycles, so x stays resident in VMEM across Cout tiles;
    # only the small weight tile is re-fetched.
    # TODO(synk): for very large Cin or H*W, add Cin-reduction / H-halo tiling
    # (two-pass norm) so a single image's slabs fit v7x's 64 MiB VMEM.
    out = pl.pallas_call(
        kernel,
        out_shape=jax.ShapeDtypeStruct((N, Cout, HW), x_nchw.dtype),
        grid_spec=pltpu.PrefetchScalarGridSpec(
            num_scalar_prefetch=0,
            grid=(N, n_co),
            in_specs=[
                pl.BlockSpec((1, Cin, HW), lambda n, co: (n, 0, 0)),
                pl.BlockSpec((9, co_blk, Cin), lambda n, co: (0, co, 0)),
            ],
            out_specs=pl.BlockSpec((1, co_blk, HW), lambda n, co: (n, co, 0)),
        ),
        compiler_params=pltpu.CompilerParams(
            dimension_semantics=("parallel", "parallel")),
    )(x_flat, w_taps)

    return out.reshape(N, Cout, H, W)                         # NCHW, like PyTorch


def _reference(x_nchw, w_oihw, b, eps=1e-5):
    # Pure-JAX reference mirroring the PyTorch module (bias included; it
    # cancels under InstanceNorm, so the bias-free kernel must still match).
    y = jax.lax.conv_general_dilated(
        x_nchw, w_oihw, window_strides=(1, 1), padding=((1, 1), (1, 1)),
        dimension_numbers=("NCHW", "OIHW", "NCHW"))
    y = y + b[None, :, None, None]
    mean = jnp.mean(y, axis=(2, 3), keepdims=True)
    var = jnp.mean((y - mean) ** 2, axis=(2, 3), keepdims=True)
    y = (y - mean) * jax.lax.rsqrt(var + eps)
    return jnp.maximum(y, 0.0)


if __name__ == "__main__":
    key = jax.random.PRNGKey(0)
    k_x, k_w, k_b = jax.random.split(key, 3)

    N, Cin, Cout, H, W = 2, 4, 8, 16, 16

    # PyTorch-style NCHW input and OIHW conv weights.
    x = jax.random.normal(k_x, (N, Cin, H, W), dtype=jnp.float32)
    w = 0.1 * jax.random.normal(k_w, (Cout, Cin, 3, 3), dtype=jnp.float32)
    b = 0.1 * jax.random.normal(k_b, (Cout,), dtype=jnp.float32)

    out = cna_forward(x, w, b)
    out = jax.block_until_ready(out)

    ref = _reference(x, w, b)
    assert out.shape == ref.shape == (N, Cout, H, W)
    assert jnp.allclose(out, ref, atol=2e-4, rtol=2e-4), \
        float(jnp.max(jnp.abs(out - ref)))

    print("KERNEL_OK")
</pallas_src>

<mosaic_0001>
module attributes {stable_mosaic.version = 11 : i64} {
  func.func @_cna_kernel(%arg0: i32, %arg1: i32, %arg2: memref<1x4x256xf32, #tpu.memory_space<vmem>>, %arg3: memref<9x8x4xf32, #tpu.memory_space<vmem>>, %arg4: memref<1x8x256xf32, #tpu.memory_space<vmem>>) attributes {dimension_semantics = [#tpu.dimension_semantics<parallel>, #tpu.dimension_semantics<parallel>], iteration_bounds = array<i64: 2, 1>, scalar_prefetch = 0 : i64, scratch_operands = 0 : i64, tpu.core_type = #tpu.core_type<tc>, window_params = [{transform_indices = @transform_0, window_bounds = array<i64: 1, 4, 256>}, {transform_indices = @transform_1, window_bounds = array<i64: 9, 8, 4>}, {transform_indices = @transform_2, window_bounds = array<i64: 1, 8, 256>}]} {
    %c0 = arith.constant 0 : index
    %c0_0 = arith.constant 0 : index
    %c0_1 = arith.constant 0 : index
    %0 = vector.load %arg2[%c0, %c0_0, %c0_1] : memref<1x4x256xf32, #tpu.memory_space<vmem>>, vector<1x4x256xf32>
    %1 = vector.shape_cast %0 : vector<1x4x256xf32> to vector<4x256xf32>
    %2 = tpu.iota {dimensions = array<i32: 1>} : vector<1x256xi32>
    %c16_i32 = arith.constant 16 : i32
    %c0_i32 = arith.constant 0 : i32
    %3 = arith.cmpi eq, %c16_i32, %c0_i32 : i32
    %c1_i32 = arith.constant 1 : i32
    %4 = arith.select %3, %c1_i32, %c16_i32 : i32
    %5 = vector.broadcast %4 : i32 to vector<1x256xi32>
    %6 = arith.remsi %2, %5 : vector<1x256xi32>
    %c0_i32_2 = arith.constant 0 : i32
    %7 = vector.broadcast %c0_i32_2 : i32 to vector<1x256xi32>
    %8 = arith.cmpi ne, %6, %7 : vector<1x256xi32>
    %c0_i32_3 = arith.constant 0 : i32
    %9 = vector.broadcast %c0_i32_3 : i32 to vector<1x256xi32>
    %10 = arith.cmpi slt, %6, %9 : vector<1x256xi32>
    %c0_i32_4 = arith.constant 0 : i32
    %11 = arith.cmpi slt, %4, %c0_i32_4 : i32
    %12 = vector.broadcast %11 : i1 to vector<1x256xi1>
    %13 = vector.broadcast %12 : vector<1x256xi1> to vector<1x256xi1>
    %14 = arith.xori %10, %13 : vector<1x256xi1>
    %15 = arith.andi %14, %8 : vector<1x256xi1>
    %16 = vector.broadcast %4 : i32 to vector<1x256xi32>
    %17 = arith.addi %6, %16 : vector<1x256xi32>
    %18 = arith.select %15, %17, %6 : vector<1x256xi1>, vector<1x256xi32>
    %c0_i32_5 = arith.constant 0 : i32
    %19 = vector.broadcast %c0_i32_5 : i32 to vector<1x256xi32>
    %20 = arith.cmpi ne, %18, %19 : vector<1x256xi32>
    %c15_i32 = arith.constant 15 : i32
    %21 = vector.broadcast %c15_i32 : i32 to vector<1x256xi32>
    %22 = arith.cmpi ne, %18, %21 : vector<1x256xi32>
    %cst = arith.constant 0.000000e+00 : f32
    %23 = vector.broadcast %cst : f32 to vector<8x256xf32>
    %cst_6 = arith.constant 0.000000e+00 : f32
    %24 = vector.broadcast %cst_6 : f32 to vector<4x17xf32>
    %25 = vector.extract_strided_slice %1 {offsets = [0, 0], sizes = [4, 239], strides = [1, 1]} : vector<4x256xf32> to vector<4x239xf32>
    %26 = tpu.concatenate %24, %25 in 1 : vector<4x17xf32>, vector<4x239xf32> -> vector<4x256xf32>
    %cst_7 = arith.constant 0.000000e+00 : f32
    %27 = vector.shape_cast %20 : vector<1x256xi1> to vector<1x256xi1>
    %28 = vector.broadcast %27 : vector<1x256xi1> to vector<4x256xi1>
    %29 = vector.broadcast %cst_7 : f32 to vector<4x256xf32>
    %30 = arith.select %28, %26, %29 : vector<4x256xi1>, vector<4x256xf32>
    %c0_8 = arith.constant 0 : index
    %c0_9 = arith.constant 0 : index
    %c0_10 = arith.constant 0 : index
    %31 = vector.load %arg3[%c0_8, %c0_9, %c0_10] : memref<9x8x4xf32, #tpu.memory_space<vmem>>, vector<1x8x4xf32>
    %32 = vector.shape_cast %31 : vector<1x8x4xf32> to vector<8x4xf32>
    %cst_11 = arith.constant dense<0.000000e+00> : vector<8x256xf32>
    %33 = tpu.matmul %32, %30, %cst_11 {dimension_numbers = #tpu.dot_dimension_numbers<[1], [0], [0], [1], [0, 0, 1, 1], [], []>} : vector<8x4xf32>, vector<4x256xf32>, vector<8x256xf32> -> vector<8x256xf32>
    %34 = arith.addf %23, %33 : vector<8x256xf32>
    %cst_12 = arith.constant 0.000000e+00 : f32
    %35 = vector.broadcast %cst_12 : f32 to vector<4x16xf32>
    %36 = vector.extract_strided_slice %1 {offsets = [0, 0], sizes = [4, 240], strides = [1, 1]} : vector<4x256xf32> to vector<4x240xf32>
    %37 = tpu.concatenate %35, %36 in 1 : vector<4x16xf32>, vector<4x240xf32> -> vector<4x256xf32>
    %c1 = arith.constant 1 : index
    %c0_13 = arith.constant 0 : index
    %c0_14 = arith.constant 0 : index
    %38 = vector.load %arg3[%c1, %c0_13, %c0_14] : memref<9x8x4xf32, #tpu.memory_space<vmem>>, vector<1x8x4xf32>
    %39 = vector.shape_cast %38 : vector<1x8x4xf32> to vector<8x4xf32>
    %cst_15 = arith.constant dense<0.000000e+00> : vector<8x256xf32>
    %40 = tpu.matmul %39, %37, %cst_15 {dimension_numbers = #tpu.dot_dimension_numbers<[1], [0], [0], [1], [0, 0, 1, 1], [], []>} : vector<8x4xf32>, vector<4x256xf32>, vector<8x256xf32> -> vector<8x256xf32>
    %41 = arith.addf %34, %40 : vector<8x256xf32>
    %cst_16 = arith.constant 0.000000e+00 : f32
    %42 = vector.broadcast %cst_16 : f32 to vector<4x15xf32>
    %43 = vector.extract_strided_slice %1 {offsets = [0, 0], sizes = [4, 241], strides = [1, 1]} : vector<4x256xf32> to vector<4x241xf32>
    %44 = tpu.concatenate %42, %43 in 1 : vector<4x15xf32>, vector<4x241xf32> -> vector<4x256xf32>
    %cst_17 = arith.constant 0.000000e+00 : f32
    %45 = vector.shape_cast %22 : vector<1x256xi1> to vector<1x256xi1>
    %46 = vector.broadcast %45 : vector<1x256xi1> to vector<4x256xi1>
    %47 = vector.broadcast %cst_17 : f32 to vector<4x256xf32>
    %48 = arith.select %46, %44, %47 : vector<4x256xi1>, vector<4x256xf32>
    %c2 = arith.constant 2 : index
    %c0_18 = arith.constant 0 : index
    %c0_19 = arith.constant 0 : index
    %49 = vector.load %arg3[%c2, %c0_18, %c0_19] : memref<9x8x4xf32, #tpu.memory_space<vmem>>, vector<1x8x4xf32>
    %50 = vector.shape_cast %49 : vector<1x8x4xf32> to vector<8x4xf32>
    %cst_20 = arith.constant dense<0.000000e+00> : vector<8x256xf32>
    %51 = tpu.matmul %50, %48, %cst_20 {dimension_numbers = #tpu.dot_dimension_numbers<[1], [0], [0], [1], [0, 0, 1, 1], [], []>} : vector<8x4xf32>, vector<4x256xf32>, vector<8x256xf32> -> vector<8x256xf32>
    %52 = arith.addf %41, %51 : vector<8x256xf32>
    %cst_21 = arith.constant 0.000000e+00 : f32
    %53 = vector.broadcast %cst_21 : f32 to vector<4x1xf32>
    %54 = vector.extract_strided_slice %1 {offsets = [0, 0], sizes = [4, 255], strides = [1, 1]} : vector<4x256xf32> to vector<4x255xf32>
    %55 = tpu.concatenate %53, %54 in 1 : vector<4x1xf32>, vector<4x255xf32> -> vector<4x256xf32>
    %cst_22 = arith.constant 0.000000e+00 : f32
    %56 = vector.shape_cast %20 : vector<1x256xi1> to vector<1x256xi1>
    %57 = vector.broadcast %56 : vector<1x256xi1> to vector<4x256xi1>
    %58 = vector.broadcast %cst_22 : f32 to vector<4x256xf32>
    %59 = arith.select %57, %55, %58 : vector<4x256xi1>, vector<4x256xf32>
    %c3 = arith.constant 3 : index
    %c0_23 = arith.constant 0 : index
    %c0_24 = arith.constant 0 : index
    %60 = vector.load %arg3[%c3, %c0_23, %c0_24] : memref<9x8x4xf32, #tpu.memory_space<vmem>>, vector<1x8x4xf32>
    %61 = vector.shape_cast %60 : vector<1x8x4xf32> to vector<8x4xf32>
    %cst_25 = arith.constant dense<0.000000e+00> : vector<8x256xf32>
    %62 = tpu.matmul %61, %59, %cst_25 {dimension_numbers = #tpu.dot_dimension_numbers<[1], [0], [0], [1], [0, 0, 1, 1], [], []>} : vector<8x4xf32>, vector<4x256xf32>, vector<8x256xf32> -> vector<8x256xf32>
    %63 = arith.addf %52, %62 : vector<8x256xf32>
    %c4 = arith.constant 4 : index
    %c0_26 = arith.constant 0 : index
    %c0_27 = arith.constant 0 : index
    %64 = vector.load %arg3[%c4, %c0_26, %c0_27] : memref<9x8x4xf32, #tpu.memory_space<vmem>>, vector<1x8x4xf32>
    %65 = vector.shape_cast %64 : vector<1x8x4xf32> to vector<8x4xf32>
    %cst_28 = arith.constant dense<0.000000e+00> : vector<8x256xf32>
    %66 = tpu.matmul %65, %1, %cst_28 {dimension_numbers = #tpu.dot_dimension_numbers<[1], [0], [0], [1], [0, 0, 1, 1], [], []>} : vector<8x4xf32>, vector<4x256xf32>, vector<8x256xf32> -> vector<8x256xf32>
    %67 = arith.addf %63, %66 : vector<8x256xf32>
    %68 = vector.extract_strided_slice %1 {offsets = [0, 1], sizes = [4, 255], strides = [1, 1]} : vector<4x256xf32> to vector<4x255xf32>
    %cst_29 = arith.constant 0.000000e+00 : f32
    %69 = vector.broadcast %cst_29 : f32 to vector<4x1xf32>
    %70 = tpu.concatenate %68, %69 in 1 : vector<4x255xf32>, vector<4x1xf32> -> vector<4x256xf32>
    %cst_30 = arith.constant 0.000000e+00 : f32
    %71 = vector.shape_cast %22 : vector<1x256xi1> to vector<1x256xi1>
    %72 = vector.broadcast %71 : vector<1x256xi1> to vector<4x256xi1>
    %73 = vector.broadcast %cst_30 : f32 to vector<4x256xf32>
    %74 = arith.select %72, %70, %73 : vector<4x256xi1>, vector<4x256xf32>
    %c5 = arith.constant 5 : index
    %c0_31 = arith.constant 0 : index
    %c0_32 = arith.constant 0 : index
    %75 = vector.load %arg3[%c5, %c0_31, %c0_32] : memref<9x8x4xf32, #tpu.memory_space<vmem>>, vector<1x8x4xf32>
    %76 = vector.shape_cast %75 : vector<1x8x4xf32> to vector<8x4xf32>
    %cst_33 = arith.constant dense<0.000000e+00> : vector<8x256xf32>
    %77 = tpu.matmul %76, %74, %cst_33 {dimension_numbers = #tpu.dot_dimension_numbers<[1], [0], [0], [1], [0, 0, 1, 1], [], []>} : vector<8x4xf32>, vector<4x256xf32>, vector<8x256xf32> -> vector<8x256xf32>
    %78 = arith.addf %67, %77 : vector<8x256xf32>
    %79 = vector.extract_strided_slice %1 {offsets = [0, 15], sizes = [4, 241], strides = [1, 1]} : vector<4x256xf32> to vector<4x241xf32>
    %cst_34 = arith.constant 0.000000e+00 : f32
    %80 = vector.broadcast %cst_34 : f32 to vector<4x15xf32>
    %81 = tpu.concatenate %79, %80 in 1 : vector<4x241xf32>, vector<4x15xf32> -> vector<4x256xf32>
    %cst_35 = arith.constant 0.000000e+00 : f32
    %82 = vector.shape_cast %20 : vector<1x256xi1> to vector<1x256xi1>
    %83 = vector.broadcast %82 : vector<1x256xi1> to vector<4x256xi1>
    %84 = vector.broadcast %cst_35 : f32 to vector<4x256xf32>
    %85 = arith.select %83, %81, %84 : vector<4x256xi1>, vector<4x256xf32>
    %c6 = arith.constant 6 : index
    %c0_36 = arith.constant 0 : index
    %c0_37 = arith.constant 0 : index
    %86 = vector.load %arg3[%c6, %c0_36, %c0_37] : memref<9x8x4xf32, #tpu.memory_space<vmem>>, vector<1x8x4xf32>
    %87 = vector.shape_cast %86 : vector<1x8x4xf32> to vector<8x4xf32>
    %cst_38 = arith.constant dense<0.000000e+00> : vector<8x256xf32>
    %88 = tpu.matmul %87, %85, %cst_38 {dimension_numbers = #tpu.dot_dimension_numbers<[1], [0], [0], [1], [0, 0, 1, 1], [], []>} : vector<8x4xf32>, vector<4x256xf32>, vector<8x256xf32> -> vector<8x256xf32>
    %89 = arith.addf %78, %88 : vector<8x256xf32>
    %90 = vector.extract_strided_slice %1 {offsets = [0, 16], sizes = [4, 240], strides = [1, 1]} : vector<4x256xf32> to vector<4x240xf32>
    %cst_39 = arith.constant 0.000000e+00 : f32
    %91 = vector.broadcast %cst_39 : f32 to vector<4x16xf32>
    %92 = tpu.concatenate %90, %91 in 1 : vector<4x240xf32>, vector<4x16xf32> -> vector<4x256xf32>
    %c7 = arith.constant 7 : index
    %c0_40 = arith.constant 0 : index
    %c0_41 = arith.constant 0 : index
    %93 = vector.load %arg3[%c7, %c0_40, %c0_41] : memref<9x8x4xf32, #tpu.memory_space<vmem>>, vector<1x8x4xf32>
    %94 = vector.shape_cast %93 : vector<1x8x4xf32> to vector<8x4xf32>
    %cst_42 = arith.constant dense<0.000000e+00> : vector<8x256xf32>
    %95 = tpu.matmul %94, %92, %cst_42 {dimension_numbers = #tpu.dot_dimension_numbers<[1], [0], [0], [1], [0, 0, 1, 1], [], []>} : vector<8x4xf32>, vector<4x256xf32>, vector<8x256xf32> -> vector<8x256xf32>
    %96 = arith.addf %89, %95 : vector<8x256xf32>
    %97 = vector.extract_strided_slice %1 {offsets = [0, 17], sizes = [4, 239], strides = [1, 1]} : vector<4x256xf32> to vector<4x239xf32>
    %cst_43 = arith.constant 0.000000e+00 : f32
    %98 = vector.broadcast %cst_43 : f32 to vector<4x17xf32>
    %99 = tpu.concatenate %97, %98 in 1 : vector<4x239xf32>, vector<4x17xf32> -> vector<4x256xf32>
    %cst_44 = arith.constant 0.000000e+00 : f32
    %100 = vector.shape_cast %22 : vector<1x256xi1> to vector<1x256xi1>
    %101 = vector.broadcast %100 : vector<1x256xi1> to vector<4x256xi1>
    %102 = vector.broadcast %cst_44 : f32 to vector<4x256xf32>
    %103 = arith.select %101, %99, %102 : vector<4x256xi1>, vector<4x256xf32>
    %c8 = arith.constant 8 : index
    %c0_45 = arith.constant 0 : index
    %c0_46 = arith.constant 0 : index
    %104 = vector.load %arg3[%c8, %c0_45, %c0_46] : memref<9x8x4xf32, #tpu.memory_space<vmem>>, vector<1x8x4xf32>
    %105 = vector.shape_cast %104 : vector<1x8x4xf32> to vector<8x4xf32>
    %cst_47 = arith.constant dense<0.000000e+00> : vector<8x256xf32>
    %106 = tpu.matmul %105, %103, %cst_47 {dimension_numbers = #tpu.dot_dimension_numbers<[1], [0], [0], [1], [0, 0, 1, 1], [], []>} : vector<8x4xf32>, vector<4x256xf32>, vector<8x256xf32> -> vector<8x256xf32>
    %107 = arith.addf %96, %106 : vector<8x256xf32>
    %cst_48 = arith.constant dense<0.000000e+00> : vector<8xf32>
    %108 = vector.multi_reduction <add>, %107, %cst_48 [1] : vector<8x256xf32> to vector<8xf32>
    %109 = vector.shape_cast %108 : vector<8xf32> to vector<8x1xf32>
    %110 = arith.mulf %107, %107 : vector<8x256xf32>
    %cst_49 = arith.constant dense<0.000000e+00> : vector<8xf32>
    %111 = vector.multi_reduction <add>, %110, %cst_49 [1] : vector<8x256xf32> to vector<8xf32>
    %112 = vector.shape_cast %111 : vector<8xf32> to vector<8x1xf32>
    %cst_50 = arith.constant 3.906250e-03 : f32
    %113 = vector.broadcast %cst_50 : f32 to vector<8x1xf32>
    %114 = arith.mulf %109, %113 : vector<8x1xf32>
    %cst_51 = arith.constant 3.906250e-03 : f32
    %115 = vector.broadcast %cst_51 : f32 to vector<8x1xf32>
    %116 = arith.mulf %112, %115 : vector<8x1xf32>
    %117 = arith.mulf %114, %114 : vector<8x1xf32>
    %118 = arith.subf %116, %117 : vector<8x1xf32>
    %119 = vector.broadcast %114 : vector<8x1xf32> to vector<8x256xf32>
    %120 = arith.subf %107, %119 : vector<8x256xf32>
    %cst_52 = arith.constant 9.99999974E-6 : f32
    %121 = vector.broadcast %cst_52 : f32 to vector<8x1xf32>
    %122 = arith.addf %118, %121 : vector<8x1xf32>
    %123 = math.rsqrt %122 : vector<8x1xf32>
    %124 = vector.broadcast %123 : vector<8x1xf32> to vector<8x256xf32>
    %125 = arith.mulf %120, %124 : vector<8x256xf32>
    %cst_53 = arith.constant 0.000000e+00 : f32
    %126 = vector.broadcast %cst_53 : f32 to vector<8x256xf32>
    %127 = arith.maximumf %125, %126 : vector<8x256xf32>
    %128 = vector.shape_cast %127 : vector<8x256xf32> to vector<1x8x256xf32>
    %c0_54 = arith.constant 0 : index
    %c0_55 = arith.constant 0 : index
    %c0_56 = arith.constant 0 : index
    %129 = vector.load %arg4[%c0_54, %c0_55, %c0_56] : memref<1x8x256xf32, #tpu.memory_space<vmem>>, vector<1x8x256xf32>
    tpu.vector_store %arg4[%c0_54, %c0_55, %c0_56], %128 {strides = array<i32>} : memref<1x8x256xf32, #tpu.memory_space<vmem>>, vector<1x8x256xf32>,
    return
  }
  func.func @transform_0(%arg0: i32, %arg1: i32) -> (i32, i32, i32) {
    %c0_i32 = arith.constant 0 : i32
    %c0_i32_0 = arith.constant 0 : i32
    %c0_i32_1 = arith.constant 0 : i32
    return %arg0, %c0_i32, %c0_i32_0 : i32, i32, i32
  }
  func.func @transform_1(%arg0: i32, %arg1: i32) -> (i32, i32, i32) {
    %c0_i32 = arith.constant 0 : i32
    %c0_i32_0 = arith.constant 0 : i32
    %c0_i32_1 = arith.constant 0 : i32
    return %c0_i32, %arg1, %c0_i32_0 : i32, i32, i32
  }
  func.func @transform_2(%arg0: i32, %arg1: i32) -> (i32, i32, i32) {
    %c0_i32 = arith.constant 0 : i32
    %c0_i32_0 = arith.constant 0 : i32
    return %arg0, %arg1, %c0_i32 : i32, i32, i32
  }
}

</mosaic_0001>

<llo_original>
// kernel: tpu_custom_call.1
$region0: #{tpu_custom_call.1}
  #allocation0 [shape = 'u32[]', space=smem, size = 0x4, offset = 0x4, fixed_abs, tag = 'smem constant byte address 0x4 - core index']
  #allocation1 [shape = 'u32[144,128]{1,0:T(1,128)}', space=vmem, size = 0x12000, scoped, tag = 'internal scratch']
  %s0 = inlined_call_operand.vmem [shape: f32[2,4,256], index: 0, kind: input, shape index: {}]
  %s1 = inlined_call_operand.vmem [shape: f32[9,8,4], index: 1, kind: input, shape index: {}]
  %s2 = inlined_call_operand.hbm [shape: f32[2,8,256], index: 2, kind: output, shape index: {}]
  %s3 = sld [smem:[#allocation0]]
  $region41: #{tpu_custom_call.1} parent=0
    _
  %s5 = ssub.s32 1, %s3
  %s6 = scalar_select 0, %s5, %s3
  $region1: #{tpu_custom_call.1} parent=0
    #allocation2 [shape = 'u8[16384]{0}', space=vmem, size = 0x4000, scoped, tag = 'output window, operand 0']
    #allocation3 [shape = 's32[2]{0}', space=sflag, size = 0x8, scoped, tag = 'scoped memory for tpu_custom_call.1']
    %7 = vsyncpa [#allocation3], 0
    %s8 = scalar_lea.sflag [#allocation3], 1
    %9 = vsyncpa %s8, 0
    loop: start=0, step=1, limit=4
    $region2: #{tpu_custom_call.1} parent=1 // loop_pre_header
      _
    $region3: #{tpu_custom_call.1} parent=1 // loop_header
      %s11 = sphi 0, %s15
      %p12 = scmp.ge.s32.totalorder %s11, 4
      %s18 = sphi 0, %s30
      %s19 = sphi 0, %s26
      %s20 = sphi 0, %s18
      %s21 = sphi 0, %s19
      %s22 = sphi 0, %s20
      %s23 = sphi 0, %s21
      %s33 = sphi 0, %s35
      %s36 = sphi 0, %s33
      %s37 = sphi 0, %s36
      %s53 = sphi 0, %s37
      %s59 = sphi 0, %s61
      %s62 = sphi 0, %s59
      %s63 = sphi 0, %s62
      %s79 = sphi 0, %s63
      %s87 = sphi 0, %s89
      %s90 = sphi 0, %s87
      %s91 = sphi 0, %s90
      %s107 = sphi 0, %s91
    $region4: #{tpu_custom_call.1} parent=1 // loop_header_branch
      %14 = sbr.rel (%p12) target = $region8
    $region5: #{tpu_custom_call.1} parent=1 // loop_body
      %s16 = ssub.s32 %s11, 1
      %s17 = ssub.s32 %s11, 2
      %s24 = sadd.s32 1, %s19
      %p25 = scmp.ge.s32.totalorder %s24, 1
      %s26 = scalar_select %p25, 0, %s24
      %s27 = sadd.s32 1, %s18
      %s28 = scalar_select %p25, %s27, %s18
      %p29 = scmp.ge.s32.totalorder %s28, 2
      %s30 = scalar_select %p29, 0, %s28
      %s31 = ssub.s32 %s18, %s30
      %p32 = scmp.eq.s32.totalorder %s31, 0
      %s34 = sadd.s32 %s33, 1
      %s35 = scalar_select %p32, %s33, %s34
      %p38 = pneg %p32
      %p39 = scmp.eq.s32.totalorder %s11, 1
      %p40 = por %p38, %p39
      %p41 = scmp.ne.s32.totalorder %s33, %s36
      %p42 = scmp.eq.s32.totalorder %s11, 0
      %p43 = por %p41, %p42
      %p44 = scmp.ne.s32.totalorder %s33, %s36
      %p45 = scmp.eq.s32.totalorder %s16, 1
      %p46 = por %p44, %p45
      %p47 = scmp.ne.s32.totalorder %s36, %s37
      %p48 = scmp.eq.s32.totalorder %s16, 0
      %p49 = por %p47, %p48
      %p50 = scmp.ne.s32.totalorder %s36, %s37
      %p51 = scmp.eq.s32.totalorder %s17, 1
      %p52 = por %p50, %p51
      %p54 = scmp.ne.s32.totalorder %s37, %s53
      %p55 = scmp.eq.s32.totalorder %s17, 0
      %p56 = por %p54, %p55
      %s57 = ssub.s32 %s19, %s26
      %p58 = scmp.eq.s32.totalorder %s57, 0
      %s60 = sadd.s32 %s59, 1
      %s61 = scalar_select %p58, %s59, %s60
      %p64 = pneg %p58
      %p65 = scmp.eq.s32.totalorder %s11, 1
      %p66 = por %p64, %p65
      %p67 = scmp.ne.s32.totalorder %s59, %s62
      %p68 = scmp.eq.s32.totalorder %s11, 0
      %p69 = por %p67, %p68
      %p70 = scmp.ne.s32.totalorder %s59, %s62
      %p71 = scmp.eq.s32.totalorder %s16, 1
      %p72 = por %p70, %p71
      %p73 = scmp.ne.s32.totalorder %s62, %s63
      %p74 = scmp.eq.s32.totalorder %s16, 0
      %p75 = por %p73, %p74
      %p76 = scmp.ne.s32.totalorder %s62, %s63
      %p77 = scmp.eq.s32.totalorder %s17, 1
      %p78 = por %p76, %p77
      %p80 = scmp.ne.s32.totalorder %s63, %s79
      %p81 = scmp.eq.s32.totalorder %s17, 0
      %p82 = por %p80, %p81
      %s83 = ssub.s32 %s18, %s30
      %s84 = ssub.s32 %s19, %s26
      %s85 = sor.u32 %s83, %s84
      %p86 = scmp.eq.s32.totalorder %s85, 0
      %s88 = sadd.s32 %s87, 1
      %s89 = scalar_select %p86, %s87, %s88
      %p92 = pneg %p86
      %p93 = scmp.eq.s32.totalorder %s11, 1
      %p94 = por %p92, %p93
      %p95 = scmp.ne.s32.totalorder %s87, %s90
      %p96 = scmp.eq.s32.totalorder %s11, 0
      %p97 = por %p95, %p96
      %p98 = scmp.ne.s32.totalorder %s87, %s90
      %p99 = scmp.eq.s32.totalorder %s16, 1
      %p100 = por %p98, %p99
      %p101 = scmp.ne.s32.totalorder %s90, %s91
      %p102 = scmp.eq.s32.totalorder %s16, 0
      %p103 = por %p101, %p102
      %p104 = scmp.ne.s32.totalorder %s90, %s91
      %p105 = scmp.eq.s32.totalorder %s17, 1
      %p106 = por %p104, %p105
      %p108 = scmp.ne.s32.totalorder %s91, %s107
      %p109 = scmp.eq.s32.totalorder %s17, 0
      %p110 = por %p108, %p109
      %p111 = scmp.le.s32.totalorder 1, %s11
      %p112 = scmp.lt.s32.totalorder %s11, 3
      %p113 = pnand %p111, %p112
      %p114 = pneg %p113
      // Predicated region
      $region9: #{tpu_custom_call.1} parent=5 // pred_check
        _
      $region10: #{tpu_custom_call.1} parent=5 // pred_check_branch
        %116 = sbr.rel (%p113) target = $region12
      $region11: #{tpu_custom_call.1} parent=5 // pred_region
        %s117 = ssub.s32 %s11, 1
        // Predicated region
        $region13: #{tpu_custom_call.1} parent=11 // pred_check
          %p118 = pneg %p75
        $region14: #{tpu_custom_call.1} parent=11 // pred_check_branch
          %120 = sbr.rel (%p118) target = $region16
        $region15: #{tpu_custom_call.1} parent=11 // pred_region
          %p121 = scmp.lt.s32.totalorder %s21, 0
          %s122 = scalar_select %p121, %s21, 0
          %s123 = smul.addr %s122, 8
          %s124 = scalar_lea.vmem %s1, %s123
        $region16: #{tpu_custom_call.1} parent=11 // pred_fallthru
          _
      $region12: #{tpu_custom_call.1} parent=5 // pred_fallthru
        _
      %p125 = scmp.lt.s32.totalorder %s11, 2
      // Predicated region
      $region17: #{tpu_custom_call.1} parent=5 // pred_check
        %p126 = pneg %p125
      $region18: #{tpu_custom_call.1} parent=5 // pred_check_branch
        %128 = sbr.rel (%p126) target = $region20
      $region19: #{tpu_custom_call.1} parent=5 // pred_region
        // Predicated region
        $region21: #{tpu_custom_call.1} parent=19 // pred_check
          %p129 = pneg %p43
        $region22: #{tpu_custom_call.1} parent=19 // pred_check_branch
          %131 = sbr.rel (%p129) target = $region24
        $region23: #{tpu_custom_call.1} parent=19 // pred_region
          %p132 = scmp.lt.s32.totalorder %s18, 1
          %s133 = scalar_select %p132, %s18, 1
          %s134 = smul.addr %s133, 2
          %s135 = smul.addr %s134, 4
          %s136 = scalar_lea.vmem %s0, %s135
        $region24: #{tpu_custom_call.1} parent=19 // pred_fallthru
          _
      $region20: #{tpu_custom_call.1} parent=5 // pred_fallthru
        _
      %p137 = scmp.le.s32.totalorder 1, %s11
      %p138 = scmp.lt.s32.totalorder %s11, 3
      %p139 = pnand %p137, %p138
      %p140 = pneg %p139
      // Predicated region
      $region25: #{tpu_custom_call.1} parent=5 // pred_check
        _
      $region26: #{tpu_custom_call.1} parent=5 // pred_check_branch
        %142 = sbr.rel (%p139) target = $region28
      $region27: #{tpu_custom_call.1} parent=5 // pred_region
        %s143 = ssub.s32 %s11, 1
        %p144 = scmp.lt.s32.totalorder %s20, 1
        %s145 = scalar_select %p144, %s20, 1
        %s146 = smul.addr %s145, 2
        %s147 = smul.addr %s146, 4
        %s148 = scalar_lea.vmem %s0, %s147
        %p149 = pneg %p49
        %p150 = pneg %p46
        %p151 = scmp.lt.s32.totalorder %s21, 0
        %s152 = scalar_select %p151, %s21, 0
        %s153 = smul.addr %s152, 8
        %s154 = scalar_lea.vmem %s1, %s153
        %p155 = pneg %p75
        %p156 = pneg %p72
        %p157 = pneg %p103
        %p158 = pneg %p100
        %s159 = sand.u32 %s90, 1
        %s160 = scalar_lea.sflag [#allocation3], %s159
        %s161 = sand.u32 %s90, 1
        %s162 = smul.addr %s161, 16
        %s163 = scalar_lea.vmem [#allocation2], %s162
        %p164 = scmp.lt.s32.totalorder %s20, 1
        %s165 = scalar_select %p164, %s20, 1
        %s166 = smul.addr %s165, 2
        %s167 = smul.addr %s166, 4
        %s168 = scalar_lea.vmem %s0, %s167
        %p169 = scmp.lt.s32.totalorder %s21, 0
        %s170 = scalar_select %p169, %s21, 0
        %s171 = smul.addr %s170, 8
        %s172 = scalar_lea.vmem %s1, %s171
        %v173 = vld [vmem:[%s168] sm:$0xff]
        %v174 = vlaneseq
        %v175 = vand.u32 %v174, 127
        %v176 = vadd.s32 %v175, 128
        %vm177 = vcmp.lt.s32.totalorder %v175, 0
        %v178 = vsub.s32 0, %v175
        %v179 = vsel %vm177, %v178, %v175
        %v180 = vshrl.u32 %v179, 4
        %v181 = vand.u32 %v179, 15
        %v182 = vsub.s32 0, %v181
        %v183 = vsel %vm177, %v182, %v181
        %vm184 = vcmp.lt.s32.totalorder %v176, 0
        %v185 = vsub.s32 0, %v176
        %v186 = vsel %vm184, %v185, %v176
        %v187 = vshrl.u32 %v186, 4
        %v188 = vand.u32 %v186, 15
        %v189 = vsub.s32 0, %v188
        %v190 = vsel %vm184, %v189, %v188
        %vm191 = vcmp.ne.s32.totalorder %v183, 0
        %vm192 = vcmp.ne.s32.totalorder %v190, 0
        %vm193 = vcmp.lt.s32.totalorder %v183, 0
        %vm194 = vcmp.lt.s32.totalorder %v190, 0
        %vm195 = vmand %vm193, %vm191
        %vm196 = vmand %vm194, %vm192
        %v197 = vadd.s32 %v183, 16
        %v198 = vadd.s32 %v190, 16
        %v199 = vsel %vm195, %v197, %v183
        %v200 = vsel %vm196, %v198, %v190
        %vm201 = vcmp.ne.s32.totalorder %v199, 0
        %vm202 = vcmp.ne.s32.totalorder %v200, 0
        %vm203 = vcmp.ne.s32.totalorder %v199, 15
        %vm204 = vcmp.ne.s32.totalorder %v200, 15
        %v206 = vcombine.high %v173, %v173
        %207 = vrot.lane.b32.xlu0 %v173, 17
        %v208 = vpop.permute.xlu0 %207
        %209 = vrot.lane.b32.xlu0 %v206, 17
        %v210 = vpop.permute.xlu0 %209
        %vm211 = vcmask 138240
        %v212 = vsel %vm211, %v208, %v210
        %v215 = vsel %vm211, 0.0, %v208
        %v216 = vsel %vm201, 1, 0
        %v217 = vsel %vm202, 1, 0
        %vm218 = vcmp.eq.s32.totalorder %v216, 1
        %vm219 = vcmp.eq.s32.totalorder %v217, 1
        %v220 = vsel %vm218, %v215, 0.0
        %v221 = vsel %vm219, %v212, 0.0
        %v222 = vld [vmem:[%s172] sm:$0xff]
        %223 = vrot.lane.b32.xlu0 %v173, 16
        %v224 = vpop.permute.xlu0 %223
        %225 = vrot.lane.b32.xlu0 %v206, 16
        %v226 = vpop.permute.xlu0 %225
        %vm227 = vcmask 130048
        %v228 = vsel %vm227, %v224, %v226
        %v230 = vsel %vm227, 0.0, %v224
        %s231 = scalar_lea.vmem %s172, 8
        %v232 = vld [vmem:[%s231] sm:$0xff]
        %vm233 = vcmask 31744
        %v235 = vsel %vm233, %v232, 0
        %vm237 = vcmask 1043456
        %v239 = vsel %vm237, %v230, 0
        %v241 = vsel %vm237, %v228, 0
        %243 = vmatprep.subr.mxu0 %v241
        %244 = vmatpush1.msra.mxu0 %v239
        %245 = vmatprep.subr.mxu0 0.0
        %246 = vmatpush1.msra.mxu0 0.0
        %247 = vmatprep.subr.mxu0 0.0
        %248 = vmatpush1.msra.mxu0 0.0
        %249 = vmatprep.subr.mxu0 0.0
        %250 = vmatpush1.msra.mxu0 0.0
        %251 = vmatprep.subr.mxu0 0.0
        %252 = vmatpush1.msra.mxu0 0.0
        %253 = vmatprep.subr.mxu0 0.0
        %254 = vmatpush1.msra.mxu0 0.0
        %255 = vmatprep.subr.mxu0 0.0
        %256 = vmatpush1.msra.mxu0 0.0
        %257 = vmatprep.subr.mxu0 0.0
        %258 = vmatpush1.msra.mxu0 0.0
        %259 = vmatprep.subr.mxu0 0.0
        %260 = vmatpush1.msra.mxu0 0.0
        %261 = vmatprep.subr.mxu0 0.0
        %262 = vmatpush1.msra.mxu0 0.0
        %263 = vmatprep.subr.mxu0 0.0
        %264 = vmatpush1.msra.mxu0 0.0
        %265 = vmatprep.subr.mxu0 0.0
        %266 = vmatpush1.msra.mxu0 0.0
        %267 = vmatprep.subr.mxu0 0.0
        %268 = vmatpush1.msra.mxu0 0.0
        %269 = vmatprep.subr.mxu0 0.0
        %270 = vmatpush1.msra.mxu0 0.0
        %271 = vmatprep.subr.mxu0 0.0
        %272 = vmatpush1.msra.mxu0 0.0
        %273 = vmatprep.subr.mxu0 0.0
        %274 = vmatpush1.msra.mxu0 0.0
        %275 = vmatprep.subr.mxu0 0.0
        %276 = vmatpush1.msra.mxu0 0.0
        %277 = vmatprep.subr.mxu0 0.0
        %278 = vmatpush1.msra.mxu0 0.0
        %279 = vmatprep.subr.mxu0 0.0
        %280 = vmatpush1.msra.mxu0 0.0
        %281 = vmatprep.subr.mxu0 0.0
        %282 = vmatpush1.msra.mxu0 0.0
        %283 = vmatprep.subr.mxu0 0.0
        %284 = vmatpush1.msra.mxu0 0.0
        %285 = vmatprep.subr.mxu0 0.0
        %286 = vmatpush1.msra.mxu0 0.0
        %287 = vmatprep.subr.mxu0 0.0
        %288 = vmatpush1.msra.mxu0 0.0
        %289 = vmatprep.subr.mxu0 0.0
        %290 = vmatpush1.msra.mxu0 0.0
        %291 = vmatprep.subr.mxu0 0.0
        %292 = vmatpush1.msra.mxu0 0.0
        %293 = vmatprep.subr.mxu0 0.0
        %294 = vmatpush1.msra.mxu0 0.0
        %295 = vmatprep.subr.mxu0 0.0
        %296 = vmatpush1.msra.mxu0 0.0
        %297 = vmatprep.subr.mxu0 0.0
        %298 = vmatpush1.msra.mxu0 0.0
        %299 = vmatprep.subr.mxu0 0.0
        %300 = vmatpush1.msra.mxu0 0.0
        %301 = vmatprep.subr.mxu0 0.0
        %302 = vmatpush1.msra.mxu0 0.0
        %303 = vmatprep.subr.mxu0 0.0
        %304 = vmatpush1.msra.mxu0 0.0
        %305 = vmatprep.subr.mxu0 0.0
        %306 = vmatpush1.msra.mxu0 0.0
        %307 = vmatprep.mubr.f32.mxu0 0.0
        %308 = vmatmul.mubr.f32.gmra.mrb[0].mxu0 %v235
        %v309 = vpop.f32.mrb[0].mxu0
        %v310 = vadd.f32 0.0, %v309
        %v311 = vpop.f32.mrb[0].mxu0
        %v312 = vadd.f32 0.0, %v311
        %313 = vdwg.mxu0
        %v315 = vsel %vm233, %v222, 0
        %v318 = vsel %vm237, %v220, 0
        %v321 = vsel %vm237, %v221, 0
        %323 = vmatprep.subr.mxu0 %v321
        %324 = vmatpush1.msra.mxu0 %v318
        %325 = vmatprep.subr.mxu0 0.0
        %326 = vmatpush1.msra.mxu0 0.0
        %327 = vmatprep.subr.mxu0 0.0
        %328 = vmatpush1.msra.mxu0 0.0
        %329 = vmatprep.subr.mxu0 0.0
        %330 = vmatpush1.msra.mxu0 0.0
        %331 = vmatprep.subr.mxu0 0.0
        %332 = vmatpush1.msra.mxu0 0.0
        %333 = vmatprep.subr.mxu0 0.0
        %334 = vmatpush1.msra.mxu0 0.0
        %335 = vmatprep.subr.mxu0 0.0
        %336 = vmatpush1.msra.mxu0 0.0
        %337 = vmatprep.subr.mxu0 0.0
        %338 = vmatpush1.msra.mxu0 0.0
        %339 = vmatprep.subr.mxu0 0.0
        %340 = vmatpush1.msra.mxu0 0.0
        %341 = vmatprep.subr.mxu0 0.0
        %342 = vmatpush1.msra.mxu0 0.0
        %343 = vmatprep.subr.mxu0 0.0
        %344 = vmatpush1.msra.mxu0 0.0
        %345 = vmatprep.subr.mxu0 0.0
        %346 = vmatpush1.msra.mxu0 0.0
        %347 = vmatprep.subr.mxu0 0.0
        %348 = vmatpush1.msra.mxu0 0.0
        %349 = vmatprep.subr.mxu0 0.0
        %350 = vmatpush1.msra.mxu0 0.0
        %351 = vmatprep.subr.mxu0 0.0
        %352 = vmatpush1.msra.mxu0 0.0
        %353 = vmatprep.subr.mxu0 0.0
        %354 = vmatpush1.msra.mxu0 0.0
        %355 = vmatprep.subr.mxu0 0.0
        %356 = vmatpush1.msra.mxu0 0.0
        %357 = vmatprep.subr.mxu0 0.0
        %358 = vmatpush1.msra.mxu0 0.0
        %359 = vmatprep.subr.mxu0 0.0
        %360 = vmatpush1.msra.mxu0 0.0
        %361 = vmatprep.subr.mxu0 0.0
        %362 = vmatpush1.msra.mxu0 0.0
        %363 = vmatprep.subr.mxu0 0.0
        %364 = vmatpush1.msra.mxu0 0.0
        %365 = vmatprep.subr.mxu0 0.0
        %366 = vmatpush1.msra.mxu0 0.0
        %367 = vmatprep.subr.mxu0 0.0
        %368 = vmatpush1.msra.mxu0 0.0
        %369 = vmatprep.subr.mxu0 0.0
        %370 = vmatpush1.msra.mxu0 0.0
        %371 = vmatprep.subr.mxu0 0.0
        %372 = vmatpush1.msra.mxu0 0.0
        %373 = vmatprep.subr.mxu0 0.0
        %374 = vmatpush1.msra.mxu0 0.0
        %375 = vmatprep.subr.mxu0 0.0
        %376 = vmatpush1.msra.mxu0 0.0
        %377 = vmatprep.subr.mxu0 0.0
        %378 = vmatpush1.msra.mxu0 0.0
        %379 = vmatprep.subr.mxu0 0.0
        %380 = vmatpush1.msra.mxu0 0.0
        %381 = vmatprep.subr.mxu0 0.0
        %382 = vmatpush1.msra.mxu0 0.0
        %383 = vmatprep.subr.mxu0 0.0
        %384 = vmatpush1.msra.mxu0 0.0
        %385 = vmatprep.subr.mxu0 0.0
        %386 = vmatpush1.msra.mxu0 0.0
        %387 = vmatprep.mubr.f32.mxu0 0.0
        %388 = vmatmul.mubr.f32.gmra.mrb[0].mxu0 %v315
        %v389 = vpop.f32.mrb[0].mxu0
        %v390 = vadd.f32 %v310, %v389
        %v391 = vpop.f32.mrb[0].mxu0
        %v392 = vadd.f32 %v312, %v391
        %393 = vdwg.mxu0
        %394 = vrot.lane.b32.xlu0 %v173, 15
        %v395 = vpop.permute.xlu0 %394
        %396 = vrot.lane.b32.xlu0 %v206, 15
        %v397 = vpop.permute.xlu0 %396
        %vm398 = vcmask 121856
        %v399 = vsel %vm398, %v395, %v397
        %v402 = vsel %vm398, 0.0, %v395
        %v403 = vsel %vm203, 1, 0
        %v404 = vsel %vm204, 1, 0
        %vm405 = vcmp.eq.s32.totalorder %v403, 1
        %vm406 = vcmp.eq.s32.totalorder %v404, 1
        %v407 = vsel %vm405, %v402, 0.0
        %v408 = vsel %vm406, %v399, 0.0
        %s409 = scalar_lea.vmem %s172, 16
        %v410 = vld [vmem:[%s409] sm:$0xff]
        %v412 = vsel %vm233, %v410, 0
        %v415 = vsel %vm237, %v407, 0
        %v418 = vsel %vm237, %v408, 0
        %420 = vmatprep.subr.mxu0 %v418
        %421 = vmatpush1.msra.mxu0 %v415
        %422 = vmatprep.subr.mxu0 0.0
        %423 = vmatpush1.msra.mxu0 0.0
        %424 = vmatprep.subr.mxu0 0.0
        %425 = vmatpush1.msra.mxu0 0.0
        %426 = vmatprep.subr.mxu0 0.0
        %427 = vmatpush1.msra.mxu0 0.0
        %428 = vmatprep.subr.mxu0 0.0
        %429 = vmatpush1.msra.mxu0 0.0
        %430 = vmatprep.subr.mxu0 0.0
        %431 = vmatpush1.msra.mxu0 0.0
        %432 = vmatprep.subr.mxu0 0.0
        %433 = vmatpush1.msra.mxu0 0.0
        %434 = vmatprep.subr.mxu0 0.0
        %435 = vmatpush1.msra.mxu0 0.0
        %436 = vmatprep.subr.mxu0 0.0
        %437 = vmatpush1.msra.mxu0 0.0
        %438 = vmatprep.subr.mxu0 0.0
        %439 = vmatpush1.msra.mxu0 0.0
        %440 = vmatprep.subr.mxu0 0.0
        %441 = vmatpush1.msra.mxu0 0.0
        %442 = vmatprep.subr.mxu0 0.0
        %443 = vmatpush1.msra.mxu0 0.0
        %444 = vmatprep.subr.mxu0 0.0
        %445 = vmatpush1.msra.mxu0 0.0
        %446 = vmatprep.subr.mxu0 0.0
        %447 = vmatpush1.msra.mxu0 0.0
        %448 = vmatprep.subr.mxu0 0.0
        %449 = vmatpush1.msra.mxu0 0.0
        %450 = vmatprep.subr.mxu0 0.0
        %451 = vmatpush1.msra.mxu0 0.0
        %452 = vmatprep.subr.mxu0 0.0
        %453 = vmatpush1.msra.mxu0 0.0
        %454 = vmatprep.subr.mxu0 0.0
        %455 = vmatpush1.msra.mxu0 0.0
        %456 = vmatprep.subr.mxu0 0.0
        %457 = vmatpush1.msra.mxu0 0.0
        %458 = vmatprep.subr.mxu0 0.0
        %459 = vmatpush1.msra.mxu0 0.0
        %460 = vmatprep.subr.mxu0 0.0
        %461 = vmatpush1.msra.mxu0 0.0
        %462 = vmatprep.subr.mxu0 0.0
        %463 = vmatpush1.msra.mxu0 0.0
        %464 = vmatprep.subr.mxu0 0.0
        %465 = vmatpush1.msra.mxu0 0.0
        %466 = vmatprep.subr.mxu0 0.0
        %467 = vmatpush1.msra.mxu0 0.0
        %468 = vmatprep.subr.mxu0 0.0
        %469 = vmatpush1.msra.mxu0 0.0
        %470 = vmatprep.subr.mxu0 0.0
        %471 = vmatpush1.msra.mxu0 0.0
        %472 = vmatprep.subr.mxu0 0.0
        %473 = vmatpush1.msra.mxu0 0.0
        %474 = vmatprep.subr.mxu0 0.0
        %475 = vmatpush1.msra.mxu0 0.0
        %476 = vmatprep.subr.mxu0 0.0
        %477 = vmatpush1.msra.mxu0 0.0
        %478 = vmatprep.subr.mxu0 0.0
        %479 = vmatpush1.msra.mxu0 0.0
        %480 = vmatprep.subr.mxu0 0.0
        %481 = vmatpush1.msra.mxu0 0.0
        %482 = vmatprep.subr.mxu0 0.0
        %483 = vmatpush1.msra.mxu0 0.0
        %484 = vmatprep.mubr.f32.mxu0 0.0
        %485 = vmatmul.mubr.f32.gmra.mrb[0].mxu0 %v412
        %v486 = vpop.f32.mrb[0].mxu0
        %v487 = vadd.f32 0.0, %v486
        %v488 = vpop.f32.mrb[0].mxu0
        %v489 = vadd.f32 0.0, %v488
        %490 = vdwg.mxu0
        %v491 = vadd.f32 %v390, %v487
        %v492 = vadd.f32 %v392, %v489
        %493 = vrot.lane.b32.xlu0 %v173, 1
        %v494 = vpop.permute.xlu0 %493
        %495 = vrot.lane.b32.xlu0 %v206, 1
        %v496 = vpop.permute.xlu0 %495
        %vm497 = vcmask 7168
        %v498 = vsel %vm497, %v494, %v496
        %v501 = vsel %vm497, 0.0, %v494
        %v502 = vsel %vm218, %v501, 0.0
        %v503 = vsel %vm219, %v498, 0.0
        %s504 = scalar_lea.vmem %s172, 24
        %v505 = vld [vmem:[%s504] sm:$0xff]
        %v507 = vsel %vm233, %v505, 0
        %v510 = vsel %vm237, %v502, 0
        %v513 = vsel %vm237, %v503, 0
        %515 = vmatprep.subr.mxu0 %v513
        %516 = vmatpush1.msra.mxu0 %v510
        %517 = vmatprep.subr.mxu0 0.0
        %518 = vmatpush1.msra.mxu0 0.0
        %519 = vmatprep.subr.mxu0 0.0
        %520 = vmatpush1.msra.mxu0 0.0
        %521 = vmatprep.subr.mxu0 0.0
        %522 = vmatpush1.msra.mxu0 0.0
        %523 = vmatprep.subr.mxu0 0.0
        %524 = vmatpush1.msra.mxu0 0.0
        %525 = vmatprep.subr.mxu0 0.0
        %526 = vmatpush1.msra.mxu0 0.0
        %527 = vmatprep.subr.mxu0 0.0
        %528 = vmatpush1.msra.mxu0 0.0
        %529 = vmatprep.subr.mxu0 0.0
        %530 = vmatpush1.msra.mxu0 0.0
        %531 = vmatprep.subr.mxu0 0.0
        %532 = vmatpush1.msra.mxu0 0.0
        %533 = vmatprep.subr.mxu0 0.0
        %534 = vmatpush1.msra.mxu0 0.0
        %535 = vmatprep.subr.mxu0 0.0
        %536 = vmatpush1.msra.mxu0 0.0
        %537 = vmatprep.subr.mxu0 0.0
        %538 = vmatpush1.msra.mxu0 0.0
        %539 = vmatprep.subr.mxu0 0.0
        %540 = vmatpush1.msra.mxu0 0.0
        %541 = vmatprep.subr.mxu0 0.0
        %542 = vmatpush1.msra.mxu0 0.0
        %543 = vmatprep.subr.mxu0 0.0
        %544 = vmatpush1.msra.mxu0 0.0
        %545 = vmatprep.subr.mxu0 0.0
        %546 = vmatpush1.msra.mxu0 0.0
        %547 = vmatprep.subr.mxu0 0.0
        %548 = vmatpush1.msra.mxu0 0.0
        %549 = vmatprep.subr.mxu0 0.0
        %550 = vmatpush1.msra.mxu0 0.0
        %551 = vmatprep.subr.mxu0 0.0
        %552 = vmatpush1.msra.mxu0 0.0
        %553 = vmatprep.subr.mxu0 0.0
        %554 = vmatpush1.msra.mxu0 0.0
        %555 = vmatprep.subr.mxu0 0.0
        %556 = vmatpush1.msra.mxu0 0.0
        %557 = vmatprep.subr.mxu0 0.0
        %558 = vmatpush1.msra.mxu0 0.0
        %559 = vmatprep.subr.mxu0 0.0
        %560 = vmatpush1.msra.mxu0 0.0
        %561 = vmatprep.subr.mxu0 0.0
        %562 = vmatpush1.msra.mxu0 0.0
        %563 = vmatprep.subr.mxu0 0.0
        %564 = vmatpush1.msra.mxu0 0.0
        %565 = vmatprep.subr.mxu0 0.0
        %566 = vmatpush1.msra.mxu0 0.0
        %567 = vmatprep.subr.mxu0 0.0
        %568 = vmatpush1.msra.mxu0 0.0
        %569 = vmatprep.subr.mxu0 0.0
        %570 = vmatpush1.msra.mxu0 0.0
        %571 = vmatprep.subr.mxu0 0.0
        %572 = vmatpush1.msra.mxu0 0.0
        %573 = vmatprep.subr.mxu0 0.0
        %574 = vmatpush1.msra.mxu0 0.0
        %575 = vmatprep.subr.mxu0 0.0
        %576 = vmatpush1.msra.mxu0 0.0
        %577 = vmatprep.subr.mxu0 0.0
        %578 = vmatpush1.msra.mxu0 0.0
        %579 = vmatprep.mubr.f32.mxu0 0.0
        %580 = vmatmul.mubr.f32.gmra.mrb[0].mxu0 %v507
        %v581 = vpop.f32.mrb[0].mxu0
        %v582 = vadd.f32 0.0, %v581
        %v583 = vpop.f32.mrb[0].mxu0
        %v584 = vadd.f32 0.0, %v583
        %585 = vdwg.mxu0
        %v586 = vadd.f32 %v491, %v582
        %v587 = vadd.f32 %v492, %v584
        %s588 = scalar_lea.vmem %s172, 32
        %v589 = vld [vmem:[%s588] sm:$0xff]
        %v591 = vsel %vm233, %v589, 0
        %v593 = vsel %vm237, %v173, 0
        %v595 = vsel %vm237, %v206, 0
        %597 = vmatprep.subr.mxu0 %v595
        %598 = vmatpush1.msra.mxu0 %v593
        %599 = vmatprep.subr.mxu0 0.0
        %600 = vmatpush1.msra.mxu0 0.0
        %601 = vmatprep.subr.mxu0 0.0
        %602 = vmatpush1.msra.mxu0 0.0
        %603 = vmatprep.subr.mxu0 0.0
        %604 = vmatpush1.msra.mxu0 0.0
        %605 = vmatprep.subr.mxu0 0.0
        %606 = vmatpush1.msra.mxu0 0.0
        %607 = vmatprep.subr.mxu0 0.0
        %608 = vmatpush1.msra.mxu0 0.0
        %609 = vmatprep.subr.mxu0 0.0
        %610 = vmatpush1.msra.mxu0 0.0
        %611 = vmatprep.subr.mxu0 0.0
        %612 = vmatpush1.msra.mxu0 0.0
        %613 = vmatprep.subr.mxu0 0.0
        %614 = vmatpush1.msra.mxu0 0.0
        %615 = vmatprep.subr.mxu0 0.0
        %616 = vmatpush1.msra.mxu0 0.0
        %617 = vmatprep.subr.mxu0 0.0
        %618 = vmatpush1.msra.mxu0 0.0
        %619 = vmatprep.subr.mxu0 0.0
        %620 = vmatpush1.msra.mxu0 0.0
        %621 = vmatprep.subr.mxu0 0.0
        %622 = vmatpush1.msra.mxu0 0.0
        %623 = vmatprep.subr.mxu0 0.0
        %624 = vmatpush1.msra.mxu0 0.0
        %625 = vmatprep.subr.mxu0 0.0
        %626 = vmatpush1.msra.mxu0 0.0
        %627 = vmatprep.subr.mxu0 0.0
        %628 = vmatpush1.msra.mxu0 0.0
        %629 = vmatprep.subr.mxu0 0.0
        %630 = vmatpush1.msra.mxu0 0.0
        %631 = vmatprep.subr.mxu0 0.0
        %632 = vmatpush1.msra.mxu0 0.0
        %633 = vmatprep.subr.mxu0 0.0
        %634 = vmatpush1.msra.mxu0 0.0
        %635 = vmatprep.subr.mxu0 0.0
        %636 = vmatpush1.msra.mxu0 0.0
        %637 = vmatprep.subr.mxu0 0.0
        %638 = vmatpush1.msra.mxu0 0.0
        %639 = vmatprep.subr.mxu0 0.0
        %640 = vmatpush1.msra.mxu0 0.0
        %641 = vmatprep.subr.mxu0 0.0
        %642 = vmatpush1.msra.mxu0 0.0
        %643 = vmatprep.subr.mxu0 0.0
        %644 = vmatpush1.msra.mxu0 0.0
        %645 = vmatprep.subr.mxu0 0.0
        %646 = vmatpush1.msra.mxu0 0.0
        %647 = vmatprep.subr.mxu0 0.0
        %648 = vmatpush1.msra.mxu0 0.0
        %649 = vmatprep.subr.mxu0 0.0
        %650 = vmatpush1.msra.mxu0 0.0
        %651 = vmatprep.subr.mxu0 0.0
        %652 = vmatpush1.msra.mxu0 0.0
        %653 = vmatprep.subr.mxu0 0.0
        %654 = vmatpush1.msra.mxu0 0.0
        %655 = vmatprep.subr.mxu0 0.0
        %656 = vmatpush1.msra.mxu0 0.0
        %657 = vmatprep.subr.mxu0 0.0
        %658 = vmatpush1.msra.mxu0 0.0
        %659 = vmatprep.subr.mxu0 0.0
        %660 = vmatpush1.msra.mxu0 0.0
        %661 = vmatprep.mubr.f32.mxu0 0.0
        %662 = vmatmul.mubr.f32.gmra.mrb[0].mxu0 %v591
        %v663 = vpop.f32.mrb[0].mxu0
        %v664 = vadd.f32 0.0, %v663
        %v665 = vpop.f32.mrb[0].mxu0
        %v666 = vadd.f32 0.0, %v665
        %667 = vdwg.mxu0
        %v668 = vadd.f32 %v586, %v664
        %v669 = vadd.f32 %v587, %v666
        %670 = vrot.lane.b32.xlu0 %v173, 127
        %v671 = vpop.permute.xlu0 %670
        %672 = vrot.lane.b32.xlu0 %v206, 127
        %v673 = vpop.permute.xlu0 %672
        %vm674 = vcmask 1039360
        %v675 = vsel %vm674, %v671, %v673
        %v678 = vsel %vm674, %v673, 0.0
        %v679 = vsel %vm405, %v675, 0.0
        %v680 = vsel %vm406, %v678, 0.0
        %s681 = scalar_lea.vmem %s172, 40
        %v682 = vld [vmem:[%s681] sm:$0xff]
        %v684 = vsel %vm233, %v682, 0
        %v687 = vsel %vm237, %v679, 0
        %v690 = vsel %vm237, %v680, 0
        %692 = vmatprep.subr.mxu0 %v690
        %693 = vmatpush1.msra.mxu0 %v687
        %694 = vmatprep.subr.mxu0 0.0
        %695 = vmatpush1.msra.mxu0 0.0
        %696 = vmatprep.subr.mxu0 0.0
        %697 = vmatpush1.msra.mxu0 0.0
        %698 = vmatprep.subr.mxu0 0.0
        %699 = vmatpush1.msra.mxu0 0.0
        %700 = vmatprep.subr.mxu0 0.0
        %701 = vmatpush1.msra.mxu0 0.0
        %702 = vmatprep.subr.mxu0 0.0
        %703 = vmatpush1.msra.mxu0 0.0
        %704 = vmatprep.subr.mxu0 0.0
        %705 = vmatpush1.msra.mxu0 0.0
        %706 = vmatprep.subr.mxu0 0.0
        %707 = vmatpush1.msra.mxu0 0.0
        %708 = vmatprep.subr.mxu0 0.0
        %709 = vmatpush1.msra.mxu0 0.0
        %710 = vmatprep.subr.mxu0 0.0
        %711 = vmatpush1.msra.mxu0 0.0
        %712 = vmatprep.subr.mxu0 0.0
        %713 = vmatpush1.msra.mxu0 0.0
        %714 = vmatprep.subr.mxu0 0.0
        %715 = vmatpush1.msra.mxu0 0.0
        %716 = vmatprep.subr.mxu0 0.0
        %717 = vmatpush1.msra.mxu0 0.0
        %718 = vmatprep.subr.mxu0 0.0
        %719 = vmatpush1.msra.mxu0 0.0
        %720 = vmatprep.subr.mxu0 0.0
        %721 = vmatpush1.msra.mxu0 0.0
        %722 = vmatprep.subr.mxu0 0.0
        %723 = vmatpush1.msra.mxu0 0.0
        %724 = vmatprep.subr.mxu0 0.0
        %725 = vmatpush1.msra.mxu0 0.0
        %726 = vmatprep.subr.mxu0 0.0
        %727 = vmatpush1.msra.mxu0 0.0
        %728 = vmatprep.subr.mxu0 0.0
        %729 = vmatpush1.msra.mxu0 0.0
        %730 = vmatprep.subr.mxu0 0.0
        %731 = vmatpush1.msra.mxu0 0.0
        %732 = vmatprep.subr.mxu0 0.0
        %733 = vmatpush1.msra.mxu0 0.0
        %734 = vmatprep.subr.mxu0 0.0
        %735 = vmatpush1.msra.mxu0 0.0
        %736 = vmatprep.subr.mxu0 0.0
        %737 = vmatpush1.msra.mxu0 0.0
        %738 = vmatprep.subr.mxu0 0.0
        %739 = vmatpush1.msra.mxu0 0.0
        %740 = vmatprep.subr.mxu0 0.0
        %741 = vmatpush1.msra.mxu0 0.0
        %742 = vmatprep.subr.mxu0 0.0
        %743 = vmatpush1.msra.mxu0 0.0
        %744 = vmatprep.subr.mxu0 0.0
        %745 = vmatpush1.msra.mxu0 0.0
        %746 = vmatprep.subr.mxu0 0.0
        %747 = vmatpush1.msra.mxu0 0.0
        %748 = vmatprep.subr.mxu0 0.0
        %749 = vmatpush1.msra.mxu0 0.0
        %750 = vmatprep.subr.mxu0 0.0
        %751 = vmatpush1.msra.mxu0 0.0
        %752 = vmatprep.subr.mxu0 0.0
        %753 = vmatpush1.msra.mxu0 0.0
        %754 = vmatprep.subr.mxu0 0.0
        %755 = vmatpush1.msra.mxu0 0.0
        %756 = vmatprep.mubr.f32.mxu0 0.0
        %757 = vmatmul.mubr.f32.gmra.mrb[0].mxu0 %v684
        %v758 = vpop.f32.mrb[0].mxu0
        %v759 = vadd.f32 0.0, %v758
        %v760 = vpop.f32.mrb[0].mxu0
        %v761 = vadd.f32 0.0, %v760
        %762 = vdwg.mxu0
        %v763 = vadd.f32 %v668, %v759
        %v764 = vadd.f32 %v669, %v761
        %765 = vrot.lane.b32.xlu0 %v173, 113
        %v766 = vpop.permute.xlu0 %765
        %767 = vrot.lane.b32.xlu0 %v206, 113
        %v768 = vpop.permute.xlu0 %767
        %vm769 = vcmask 924672
        %v770 = vsel %vm769, %v766, %v768
        %v773 = vsel %vm769, %v768, 0.0
        %v774 = vsel %vm218, %v770, 0.0
        %v775 = vsel %vm219, %v773, 0.0
        %s776 = scalar_lea.vmem %s172, 48
        %v777 = vld [vmem:[%s776] sm:$0xff]
        %v779 = vsel %vm233, %v777, 0
        %v782 = vsel %vm237, %v774, 0
        %v785 = vsel %vm237, %v775, 0
        %787 = vmatprep.subr.mxu0 %v785
        %788 = vmatpush1.msra.mxu0 %v782
        %789 = vmatprep.subr.mxu0 0.0
        %790 = vmatpush1.msra.mxu0 0.0
        %791 = vmatprep.subr.mxu0 0.0
        %792 = vmatpush1.msra.mxu0 0.0
        %793 = vmatprep.subr.mxu0 0.0
        %794 = vmatpush1.msra.mxu0 0.0
        %795 = vmatprep.subr.mxu0 0.0
        %796 = vmatpush1.msra.mxu0 0.0
        %797 = vmatprep.subr.mxu0 0.0
        %798 = vmatpush1.msra.mxu0 0.0
        %799 = vmatprep.subr.mxu0 0.0
        %800 = vmatpush1.msra.mxu0 0.0
        %801 = vmatprep.subr.mxu0 0.0
        %802 = vmatpush1.msra.mxu0 0.0
        %803 = vmatprep.subr.mxu0 0.0
        %804 = vmatpush1.msra.mxu0 0.0
        %805 = vmatprep.subr.mxu0 0.0
        %806 = vmatpush1.msra.mxu0 0.0
        %807 = vmatprep.subr.mxu0 0.0
        %808 = vmatpush1.msra.mxu0 0.0
        %809 = vmatprep.subr.mxu0 0.0
        %810 = vmatpush1.msra.mxu0 0.0
        %811 = vmatprep.subr.mxu0 0.0
        %812 = vmatpush1.msra.mxu0 0.0
        %813 = vmatprep.subr.mxu0 0.0
        %814 = vmatpush1.msra.mxu0 0.0
        %815 = vmatprep.subr.mxu0 0.0
        %816 = vmatpush1.msra.mxu0 0.0
        %817 = vmatprep.subr.mxu0 0.0
        %818 = vmatpush1.msra.mxu0 0.0
        %819 = vmatprep.subr.mxu0 0.0
        %820 = vmatpush1.msra.mxu0 0.0
        %821 = vmatprep.subr.mxu0 0.0
        %822 = vmatpush1.msra.mxu0 0.0
        %823 = vmatprep.subr.mxu0 0.0
        %824 = vmatpush1.msra.mxu0 0.0
        %825 = vmatprep.subr.mxu0 0.0
        %826 = vmatpush1.msra.mxu0 0.0
        %827 = vmatprep.subr.mxu0 0.0
        %828 = vmatpush1.msra.mxu0 0.0
        %829 = vmatprep.subr.mxu0 0.0
        %830 = vmatpush1.msra.mxu0 0.0
        %831 = vmatprep.subr.mxu0 0.0
        %832 = vmatpush1.msra.mxu0 0.0
        %833 = vmatprep.subr.mxu0 0.0
        %834 = vmatpush1.msra.mxu0 0.0
        %835 = vmatprep.subr.mxu0 0.0
        %836 = vmatpush1.msra.mxu0 0.0
        %837 = vmatprep.subr.mxu0 0.0
        %838 = vmatpush1.msra.mxu0 0.0
        %839 = vmatprep.subr.mxu0 0.0
        %840 = vmatpush1.msra.mxu0 0.0
        %841 = vmatprep.subr.mxu0 0.0
        %842 = vmatpush1.msra.mxu0 0.0
        %843 = vmatprep.subr.mxu0 0.0
        %844 = vmatpush1.msra.mxu0 0.0
        %845 = vmatprep.subr.mxu0 0.0
        %846 = vmatpush1.msra.mxu0 0.0
        %847 = vmatprep.subr.mxu0 0.0
        %848 = vmatpush1.msra.mxu0 0.0
        %849 = vmatprep.subr.mxu0 0.0
        %850 = vmatpush1.msra.mxu0 0.0
        %851 = vmatprep.mubr.f32.mxu0 0.0
        %852 = vmatmul.mubr.f32.gmra.mrb[0].mxu0 %v779
        %v853 = vpop.f32.mrb[0].mxu0
        %v854 = vadd.f32 0.0, %v853
        %v855 = vpop.f32.mrb[0].mxu0
        %v856 = vadd.f32 0.0, %v855
        %857 = vdwg.mxu0
        %v858 = vadd.f32 %v763, %v854
        %v859 = vadd.f32 %v764, %v856
        %860 = vrot.lane.b32.xlu0 %v173, 112
        %v861 = vpop.permute.xlu0 %860
        %862 = vrot.lane.b32.xlu0 %v206, 112
        %v863 = vpop.permute.xlu0 %862
        %vm864 = vcmask 916480
        %v865 = vsel %vm864, %v861, %v863
        %v867 = vsel %vm864, %v863, 0.0
        %s868 = scalar_lea.vmem %s172, 56
        %v869 = vld [vmem:[%s868] sm:$0xff]
        %v871 = vsel %vm233, %v869, 0
        %v873 = vsel %vm237, %v865, 0
        %v876 = vsel %vm237, %v867, 0
        %878 = vmatprep.subr.mxu0 %v876
        %879 = vmatpush1.msra.mxu0 %v873
        %880 = vmatprep.subr.mxu0 0.0
        %881 = vmatpush1.msra.mxu0 0.0
        %882 = vmatprep.subr.mxu0 0.0
        %883 = vmatpush1.msra.mxu0 0.0
        %884 = vmatprep.subr.mxu0 0.0
        %885 = vmatpush1.msra.mxu0 0.0
        %886 = vmatprep.subr.mxu0 0.0
        %887 = vmatpush1.msra.mxu0 0.0
        %888 = vmatprep.subr.mxu0 0.0
        %889 = vmatpush1.msra.mxu0 0.0
        %890 = vmatprep.subr.mxu0 0.0
        %891 = vmatpush1.msra.mxu0 0.0
        %892 = vmatprep.subr.mxu0 0.0
        %893 = vmatpush1.msra.mxu0 0.0
        %894 = vmatprep.subr.mxu0 0.0
        %895 = vmatpush1.msra.mxu0 0.0
        %896 = vmatprep.subr.mxu0 0.0
        %897 = vmatpush1.msra.mxu0 0.0
        %898 = vmatprep.subr.mxu0 0.0
        %899 = vmatpush1.msra.mxu0 0.0
        %900 = vmatprep.subr.mxu0 0.0
        %901 = vmatpush1.msra.mxu0 0.0
        %902 = vmatprep.subr.mxu0 0.0
        %903 = vmatpush1.msra.mxu0 0.0
        %904 = vmatprep.subr.mxu0 0.0
        %905 = vmatpush1.msra.mxu0 0.0
        %906 = vmatprep.subr.mxu0 0.0
        %907 = vmatpush1.msra.mxu0 0.0
        %908 = vmatprep.subr.mxu0 0.0
        %909 = vmatpush1.msra.mxu0 0.0
        %910 = vmatprep.subr.mxu0 0.0
        %911 = vmatpush1.msra.mxu0 0.0
        %912 = vmatprep.subr.mxu0 0.0
        %913 = vmatpush1.msra.mxu0 0.0
        %914 = vmatprep.subr.mxu0 0.0
        %915 = vmatpush1.msra.mxu0 0.0
        %916 = vmatprep.subr.mxu0 0.0
        %917 = vmatpush1.msra.mxu0 0.0
        %918 = vmatprep.subr.mxu0 0.0
        %919 = vmatpush1.msra.mxu0 0.0
        %920 = vmatprep.subr.mxu0 0.0
        %921 = vmatpush1.msra.mxu0 0.0
        %922 = vmatprep.subr.mxu0 0.0
        %923 = vmatpush1.msra.mxu0 0.0
        %924 = vmatprep.subr.mxu0 0.0
        %925 = vmatpush1.msra.mxu0 0.0
        %926 = vmatprep.subr.mxu0 0.0
        %927 = vmatpush1.msra.mxu0 0.0
        %928 = vmatprep.subr.mxu0 0.0
        %929 = vmatpush1.msra.mxu0 0.0
        %930 = vmatprep.subr.mxu0 0.0
        %931 = vmatpush1.msra.mxu0 0.0
        %932 = vmatprep.subr.mxu0 0.0
        %933 = vmatpush1.msra.mxu0 0.0
        %934 = vmatprep.subr.mxu0 0.0
        %935 = vmatpush1.msra.mxu0 0.0
        %936 = vmatprep.subr.mxu0 0.0
        %937 = vmatpush1.msra.mxu0 0.0
        %938 = vmatprep.subr.mxu0 0.0
        %939 = vmatpush1.msra.mxu0 0.0
        %940 = vmatprep.subr.mxu0 0.0
        %941 = vmatpush1.msra.mxu0 0.0
        %942 = vmatprep.mubr.f32.mxu0 0.0
        %943 = vmatmul.mubr.f32.gmra.mrb[0].mxu0 %v871
        %v944 = vpop.f32.mrb[0].mxu0
        %v945 = vadd.f32 0.0, %v944
        %v946 = vpop.f32.mrb[0].mxu0
        %v947 = vadd.f32 0.0, %v946
        %948 = vdwg.mxu0
        %v949 = vadd.f32 %v858, %v945
        %v950 = vadd.f32 %v859, %v947
        %951 = vrot.lane.b32.xlu0 %v173, 111
        %v952 = vpop.permute.xlu0 %951
        %953 = vrot.lane.b32.xlu0 %v206, 111
        %v954 = vpop.permute.xlu0 %953
        %vm955 = vcmask 908288
        %v956 = vsel %vm955, %v952, %v954
        %v959 = vsel %vm955, %v954, 0.0
        %v960 = vsel %vm405, %v956, 0.0
        %v961 = vsel %vm406, %v959, 0.0
        %s962 = scalar_lea.vmem %s172, 64
        %v963 = vld [vmem:[%s962] sm:$0xff]
        %v965 = vsel %vm233, %v963, 0
        %v968 = vsel %vm237, %v960, 0
        %v971 = vsel %vm237, %v961, 0
        %973 = vmatprep.subr.mxu0 %v971
        %974 = vmatpush1.msra.mxu0 %v968
        %975 = vmatprep.subr.mxu0 0.0
        %976 = vmatpush1.msra.mxu0 0.0
        %977 = vmatprep.subr.mxu0 0.0
        %978 = vmatpush1.msra.mxu0 0.0
        %979 = vmatprep.subr.mxu0 0.0
        %980 = vmatpush1.msra.mxu0 0.0
        %981 = vmatprep.subr.mxu0 0.0
        %982 = vmatpush1.msra.mxu0 0.0
        %983 = vmatprep.subr.mxu0 0.0
        %984 = vmatpush1.msra.mxu0 0.0
        %985 = vmatprep.subr.mxu0 0.0
        %986 = vmatpush1.msra.mxu0 0.0
        %987 = vmatprep.subr.mxu0 0.0
        %988 = vmatpush1.msra.mxu0 0.0
        %989 = vmatprep.subr.mxu0 0.0
        %990 = vmatpush1.msra.mxu0 0.0
        %991 = vmatprep.subr.mxu0 0.0
        %992 = vmatpush1.msra.mxu0 0.0
        %993 = vmatprep.subr.mxu0 0.0
        %994 = vmatpush1.msra.mxu0 0.0
        %995 = vmatprep.subr.mxu0 0.0
        %996 = vmatpush1.msra.mxu0 0.0
        %997 = vmatprep.subr.mxu0 0.0
        %998 = vmatpush1.msra.mxu0 0.0
        %999 = vmatprep.subr.mxu0 0.0
        %1000 = vmatpush1.msra.mxu0 0.0
        %1001 = vmatprep.subr.mxu0 0.0
        %1002 = vmatpush1.msra.mxu0 0.0
        %1003 = vmatprep.subr.mxu0 0.0
        %1004 = vmatpush1.msra.mxu0 0.0
        %1005 = vmatprep.subr.mxu0 0.0
        %1006 = vmatpush1.msra.mxu0 0.0
        %1007 = vmatprep.subr.mxu0 0.0
        %1008 = vmatpush1.msra.mxu0 0.0
        %1009 = vmatprep.subr.mxu0 0.0
        %1010 = vmatpush1.msra.mxu0 0.0
        %1011 = vmatprep.subr.mxu0 0.0
        %1012 = vmatpush1.msra.mxu0 0.0
        %1013 = vmatprep.subr.mxu0 0.0
        %1014 = vmatpush1.msra.mxu0 0.0
        %1015 = vmatprep.subr.mxu0 0.0
        %1016 = vmatpush1.msra.mxu0 0.0
        %1017 = vmatprep.subr.mxu0 0.0
        %1018 = vmatpush1.msra.mxu0 0.0
        %1019 = vmatprep.subr.mxu0 0.0
        %1020 = vmatpush1.msra.mxu0 0.0
        %1021 = vmatprep.subr.mxu0 0.0
        %1022 = vmatpush1.msra.mxu0 0.0
        %1023 = vmatprep.subr.mxu0 0.0
        %1024 = vmatpush1.msra.mxu0 0.0
        %1025 = vmatprep.subr.mxu0 0.0
        %1026 = vmatpush1.msra.mxu0 0.0
        %1027 = vmatprep.subr.mxu0 0.0
        %1028 = vmatpush1.msra.mxu0 0.0
        %1029 = vmatprep.subr.mxu0 0.0
        %1030 = vmatpush1.msra.mxu0 0.0
        %1031 = vmatprep.subr.mxu0 0.0
        %1032 = vmatpush1.msra.mxu0 0.0
        %1033 = vmatprep.subr.mxu0 0.0
        %1034 = vmatpush1.msra.mxu0 0.0
        %1035 = vmatprep.subr.mxu0 0.0
        %1036 = vmatpush1.msra.mxu0 0.0
        %1037 = vmatprep.mubr.f32.mxu0 0.0
        %1038 = vmatmul.mubr.f32.gmra.mrb[0].mxu0 %v965
        %v1039 = vpop.f32.mrb[0].mxu0
        %v1040 = vadd.f32 0.0, %v1039
        %v1041 = vpop.f32.mrb[0].mxu0
        %v1042 = vadd.f32 0.0, %v1041
        %1043 = vdwg.mxu0
        %v1044 = vadd.f32 %v949, %v1040
        %v1045 = vadd.f32 %v950, %v1042
        %v1046 = vadd.f32 %v1044, %v1045
        %1047 = vadd.xlane.f32.xlu0 %v1046
        %v1048 = vpop.xlane.xlu0 %1047
        %v1049 = vmul.f32 %v1044, %v1044
        %v1050 = vmul.f32 %v1045, %v1045
        %v1051 = vadd.f32 %v1049, %v1050
        %1052 = vadd.xlane.f32.xlu0 %v1051
        %v1053 = vpop.xlane.xlu0 %1052
        %v1054 = vmul.f32 %v1048, 0.00390625
        %v1055 = vmul.f32 %v1053, 0.00390625
        %v1056 = vmul.f32 %v1054, %v1054
        %v1057 = vsub.f32 %v1055, %v1056
        %v1058 = vsub.f32 %v1044, %v1054
        %v1059 = vsub.f32 %v1045, %v1054
        %v1060 = vadd.f32 %v1057, 1e-05
        %v1061 = vrsqrt.pop %v1060
        %v1062 = vmul.f32 %v1058, %v1061
        %v1063 = vmul.f32 %v1059, %v1061
        %v1064 = vmax.f32 %v1062, 0.0
        %v1065 = vmax.f32 %v1063, 0.0
        %1066 = vst [vmem:[%s163] sm:$0xff] %v1064
        %1067 = vst [vmem:[%s163 + $0x8] sm:$0xff] %v1065
        %s1068 = sand.u32 %s90, 1
        %s1069 = scalar_lea.sflag [#allocation3], %s1068
        %s1070 = sand.u32 %s90, 1
        %s1071 = smul.addr %s1070, 16
        %s1072 = scalar_lea.vmem [#allocation2], %s1071
        // Predicated region
        $region29: #{tpu_custom_call.1} parent=27 // pred_check
          %p1073 = pneg %p100
        $region30: #{tpu_custom_call.1} parent=27 // pred_check_branch
          %1075 = sbr.rel (%p1073) target = $region32
        $region31: #{tpu_custom_call.1} parent=27 // pred_region
          %s1077 = ssub.s32 256, 256
          %1078 = vsyncadd %s1069, %s1077
          %s1079 = smul.addr %s21, 2
          %s1080 = smul.addr %s20, 2
          %s1081 = sadd.s32 %s1079, %s1080
          %s1082 = smul.addr %s1081, 128
          %s1083 = scalar_lea.hbm %s2, %s1082
          %s1085 = sshll.u32 %s1072, 4
          %s1086 = int_to_ptr.vmem [resolvable:$true] %s1085
          %1088 = dma.vmem_to_hbm [thread:$0]  %s1086, 256, %s1083, %s1069
        $region32: #{tpu_custom_call.1} parent=27 // pred_fallthru
          _
      $region28: #{tpu_custom_call.1} parent=5 // pred_fallthru
        _
      %p1089 = scmp.le.s32.totalorder 2, %s11
      // Predicated region
      $region33: #{tpu_custom_call.1} parent=5 // pred_check
        %p1090 = pneg %p1089
      $region34: #{tpu_custom_call.1} parent=5 // pred_check_branch
        %1092 = sbr.rel (%p1090) target = $region36
      $region35: #{tpu_custom_call.1} parent=5 // pred_region
        %s1093 = ssub.s32 %s11, 2
        // Predicated region
        $region37: #{tpu_custom_call.1} parent=35 // pred_check
          %p1094 = pneg %p106
        $region38: #{tpu_custom_call.1} parent=35 // pred_check_branch
          %1096 = sbr.rel (%p1094) target = $region40
        $region39: #{tpu_custom_call.1} parent=35 // pred_region
          %s1097 = sand.u32 %s91, 1
          %s1098 = scalar_lea.sflag [#allocation3], %s1097
          %s1099 = sand.u32 %s91, 1
          %s1100 = smul.addr %s1099, 16
          %s1101 = scalar_lea.vmem [#allocation2], %s1100
          %1102 = dma.done %s1098, 256
        $region40: #{tpu_custom_call.1} parent=35 // pred_fallthru
          _
      $region36: #{tpu_custom_call.1} parent=5 // pred_fallthru
        _
    $region6: #{tpu_custom_call.1} parent=1 // loop_footer
      %s15 = sadd.s32 1, %s11
    $region7: #{tpu_custom_call.1} parent=1 // loop_footer_branch
      %10 = sbr.rel target = $region3
    $region8: #{tpu_custom_call.1} parent=1 // loop_exit
      _
    %1103 = vsyncpa [#allocation3], 1
    %s1104 = scalar_lea.sflag [#allocation3], 1
    %1105 = vsyncpa %s1104, 1

</llo_original>
